<compile_context>
chip_gen: v7x
topology: tpu7x:2x2x1
jax: 0.10.0
libtpu: 0.0.40
codegen_flags: <defaults>
</compile_context>

<pallas_src>
import jax
import jax.numpy as jnp
from jax import lax
from jax.experimental import pallas as pl
from jax.experimental.pallas import tpu as pltpu

EPS = 1e-6
NEG_INF = -1e30


# ---------------------------------------------------------------------------
# shared math helpers (used identically in-kernel and in the pure-JAX reference)
# ---------------------------------------------------------------------------
def _act_quant_int(x):
    """Per-token absmax 8-bit quantization, factored form.

    Returns (q, inv_scale) with q integer-valued in [-128, 127] and
    fake-quant(x) == q * inv_scale   (inv_scale shape (..., 1), per token).
    """
    a_scale = 127.0 / jnp.maximum(jnp.max(jnp.abs(x), axis=-1, keepdims=True), 1e-5)
    q = jnp.clip(jnp.round(x * a_scale), -128.0, 127.0)
    return q, 1.0 / a_scale


def _weight_quant_int(w):
    """Per-tensor ternary quantization, factored form.

    Returns (q, inv_scale) with q in {-1, 0, 1} and
    fake-quant(w) == q * inv_scale   (inv_scale scalar).
    """
    w_scale = 1.0 / jnp.maximum(jnp.mean(jnp.abs(w)), 1e-5)
    q = jnp.clip(jnp.round(w * w_scale), -1.0, 1.0)
    return q, 1.0 / w_scale


def _rmsnorm(x, g):
    ms = jnp.mean(x * x, axis=-1, keepdims=True)
    return x * lax.rsqrt(ms + EPS) * g


# ---------------------------------------------------------------------------
# parameter preparation (data-independent; hoisted out of the forward pass)
# ---------------------------------------------------------------------------
def prepare_params(layer_params):
    """Quantize, transpose, fuse and stack weights once per parameter set.

    Output weights are the exact ternary integers stored in bf16 (lossless);
    the per-tensor scales live in a small f32 table consumed from SMEM.
    """
    wqkv, w1a, w1b, w2, g1, g2, scales = [], [], [], [], [], [], []
    for p in layer_params:
        qq, iq = _weight_quant_int(p["wq_raw"])
        qk, ik = _weight_quant_int(p["wk_raw"])
        qv, iv = _weight_quant_int(p["wv_raw"])
        q1, i1 = _weight_quant_int(p["w1_raw"])   # (2*hidden, D)
        q2, i2 = _weight_quant_int(p["w2_raw"])   # (D, hidden)
        hidden = p["w2_raw"].shape[1]

        # fused q|k|v, pre-transposed to (in, out)
        wqkv.append(jnp.concatenate([qq.T, qk.T, qv.T], axis=1).astype(jnp.bfloat16))
        w1t = q1.T                                 # (D, 2*hidden)
        w1a.append(w1t[:, :hidden].astype(jnp.bfloat16))   # SwiGLU value half
        w1b.append(w1t[:, hidden:].astype(jnp.bfloat16))   # SwiGLU gate half
        w2.append(q2.T.astype(jnp.bfloat16))               # (hidden, D)
        g1.append(p["g1"].reshape(1, -1))
        g2.append(p["g2"].reshape(1, -1))
        scales.append(jnp.stack([iq, ik, iv, i1, i2]).astype(jnp.float32))

    return {
        "wqkv": jnp.stack(wqkv),      # (L, D, 3D)   bf16 ternary
        "w1a": jnp.stack(w1a),        # (L, D, H)    bf16 ternary
        "w1b": jnp.stack(w1b),        # (L, D, H)    bf16 ternary
        "w2": jnp.stack(w2),          # (L, H, D)    bf16 ternary
        "g1": jnp.stack(g1),          # (L, 1, D)    f32
        "g2": jnp.stack(g2),          # (L, 1, D)    f32
        "scales": jnp.stack(scales),  # (L, 5)       f32 (SMEM table)
    }


# ---------------------------------------------------------------------------
# fused Pallas kernel: all encoder layers for one batch element
# grid = (batch, layer); activations stay resident in the output VMEM block
# ---------------------------------------------------------------------------
def fused_encoder_kernel(scales_ref, x_ref, wqkv_ref, w1a_ref, w1b_ref, w2_ref,
                         g1_ref, g2_ref, o_ref):
    layer = pl.program_id(1)

    # On the first layer, seed the resident activation block with the input.
    @pl.when(layer == 0)
    def _():
        o_ref[...] = x_ref[...]

    x = o_ref[0]                      # (T, D) f32, resident across layer axis
    t, d = x.shape

    # per-layer, per-tensor inverse weight scales (scalars from SMEM)
    inv_wq = scales_ref[layer, 0]
    inv_wk = scales_ref[layer, 1]
    inv_wv = scales_ref[layer, 2]
    inv_w1 = scales_ref[layer, 3]
    inv_w2 = scales_ref[layer, 4]

    # --- SelfAttention: fused BitLinear q/k/v projection on the bf16 MXU path ---
    qx, inv_ax = _act_quant_int(x)                           # ints, (T, 1)
    qkv = jnp.dot(qx.astype(jnp.bfloat16), wqkv_ref[0],
                  preferred_element_type=jnp.float32) * inv_ax   # (T, 3D)
    q = qkv[:, :d] * inv_wq
    k = qkv[:, d:2 * d] * inv_wk
    v = qkv[:, 2 * d:] * inv_wv

    # causal single-head attention (contract last dims directly, no k.T copy)
    scores = lax.dot_general(q, k, (((1,), (1,)), ((), ())),
                             preferred_element_type=jnp.float32)
    scores = scores * (float(d) ** -0.5)
    row = lax.broadcasted_iota(jnp.int32, (t, t), 0)
    col = lax.broadcasted_iota(jnp.int32, (t, t), 1)
    scores = jnp.where(col <= row, scores, NEG_INF)
    scores = scores - jnp.max(scores, axis=-1, keepdims=True)
    p = jnp.exp(scores)
    denom = jnp.sum(p, axis=-1, keepdims=True)
    r = pl.reciprocal(denom, approx=True)                    # EUP slot
    r = r * (2.0 - denom * r)                                # one Newton step
    attn_out = jnp.dot(p * r, v, preferred_element_type=jnp.float32)

    # --- residual + RMSNorm1 ---
    h = _rmsnorm(x + attn_out, g1_ref[0])

    # --- MLP: BitLinear -> SwiGLU -> BitLinear (value/gate as separate matmuls) ---
    qh, inv_ah = _act_quant_int(h)
    qh16 = qh.astype(jnp.bfloat16)
    ffa = jnp.dot(qh16, w1a_ref[0],
                  preferred_element_type=jnp.float32) * inv_ah * inv_w1
    ffb = jnp.dot(qh16, w1b_ref[0],
                  preferred_element_type=jnp.float32) * inv_ah * inv_w1
    s = ffa * (ffb * jax.nn.sigmoid(ffb))                    # value * silu(gate)
    qs, inv_as = _act_quant_int(s)
    ff2 = jnp.dot(qs.astype(jnp.bfloat16), w2_ref[0],
                  preferred_element_type=jnp.float32) * inv_as * inv_w2

    # --- residual + RMSNorm2; write back into the resident block ---
    o_ref[0] = _rmsnorm(h + ff2, g2_ref[0]).astype(o_ref.dtype)


# ---------------------------------------------------------------------------
# wrapper: one pallas_call for the whole encoder stack
# ---------------------------------------------------------------------------
def transformer_encoder(x, prepared):
    b, t, d = x.shape
    num_layers = prepared["wqkv"].shape[0]

    def per_layer_spec(arr):
        return pl.BlockSpec((1,) + arr.shape[1:], lambda bi, li: (li, 0, 0))

    return pl.pallas_call(
        fused_encoder_kernel,
        out_shape=jax.ShapeDtypeStruct((b, t, d), x.dtype),
        grid=(b, num_layers),
        in_specs=[
            # per-tensor weight scales: whole table in SMEM
            pl.BlockSpec(memory_space=pltpu.MemorySpace.SMEM),
            # input x: one batch element, constant across the layer axis
            pl.BlockSpec((1, t, d), lambda bi, li: (bi, 0, 0)),
            per_layer_spec(prepared["wqkv"]),
            per_layer_spec(prepared["w1a"]),
            per_layer_spec(prepared["w1b"]),
            per_layer_spec(prepared["w2"]),
            per_layer_spec(prepared["g1"]),
            per_layer_spec(prepared["g2"]),
        ],
        # same output block revisited across the layer axis -> stays in VMEM,
        # only flushed to HBM when the batch index changes
        out_specs=pl.BlockSpec((1, t, d), lambda bi, li: (bi, 0, 0)),
        compiler_params=pltpu.CompilerParams(
            dimension_semantics=("parallel", "arbitrary")),
    )(prepared["scales"], x, prepared["wqkv"], prepared["w1a"], prepared["w1b"],
      prepared["w2"], prepared["g1"], prepared["g2"])


# ---------------------------------------------------------------------------
# pure-JAX reference (same math, no Pallas) for a correctness check.
# Uses the same prepared (ternary + scale) weights; the factored form
# Qx @ Qw * inv_scales is mathematically identical to the module's fake-quant
# BitLinear forward.
# ---------------------------------------------------------------------------
def transformer_encoder_ref(x, prepared):
    num_layers = prepared["wqkv"].shape[0]
    d = x.shape[-1]
    t = x.shape[1]
    for l in range(num_layers):
        wqkv = prepared["wqkv"][l].astype(jnp.float32)
        w1a = prepared["w1a"][l].astype(jnp.float32)
        w1b = prepared["w1b"][l].astype(jnp.float32)
        w2 = prepared["w2"][l].astype(jnp.float32)
        g1, g2 = prepared["g1"][l], prepared["g2"][l]
        sc = prepared["scales"][l]
        inv_wq, inv_wk, inv_wv, inv_w1, inv_w2 = sc[0], sc[1], sc[2], sc[3], sc[4]

        qx, inv_ax = _act_quant_int(x)
        qkv = jnp.einsum("btd,de->bte", qx, wqkv) * inv_ax
        q = qkv[..., :d] * inv_wq
        k = qkv[..., d:2 * d] * inv_wk
        v = qkv[..., 2 * d:] * inv_wv

        scores = jnp.einsum("btd,bsd->bts", q, k) * (float(d) ** -0.5)
        mask = jnp.tril(jnp.ones((t, t), bool))
        scores = jnp.where(mask, scores, NEG_INF)
        attn = jax.nn.softmax(scores, axis=-1)
        attn_out = jnp.einsum("bts,bsd->btd", attn, v)

        h = _rmsnorm(x + attn_out, g1)
        qh, inv_ah = _act_quant_int(h)
        ffa = jnp.einsum("btd,dh->bth", qh, w1a) * inv_ah * inv_w1
        ffb = jnp.einsum("btd,dh->bth", qh, w1b) * inv_ah * inv_w1
        s = ffa * (ffb * jax.nn.sigmoid(ffb))
        qs, inv_as = _act_quant_int(s)
        ff2 = jnp.einsum("bth,hd->btd", qs, w2) * inv_as * inv_w2
        x = _rmsnorm(h + ff2, g2)
    return x


# ---------------------------------------------------------------------------
# deterministic parameter init (PyTorch nn.Linear uniform init, no bias)
# ---------------------------------------------------------------------------
def init_layer_params(key, embed_dim, forward_expansion):
    hidden = forward_expansion * embed_dim
    ks = jax.random.split(key, 5)

    def lin(k, fan_in, fan_out):
        bound = 1.0 / (fan_in ** 0.5)
        return jax.random.uniform(k, (fan_out, fan_in), jnp.float32, -bound, bound)

    return {
        "wq_raw": lin(ks[0], embed_dim, embed_dim),
        "wk_raw": lin(ks[1], embed_dim, embed_dim),
        "wv_raw": lin(ks[2], embed_dim, embed_dim),
        "w1_raw": lin(ks[3], embed_dim, 2 * hidden),
        "w2_raw": lin(ks[4], hidden, embed_dim),
        "g1": jnp.ones((1, embed_dim), jnp.float32),
        "g2": jnp.ones((1, embed_dim), jnp.float32),
    }


if __name__ == "__main__":
    # Module config (small): embed_dim=32, num_heads=4 (unused by SelfAttention),
    # num_layers=2, forward_expansion=2, block_size=8; batch=2, seq=8.
    B, T = 2, 8
    embed_dim, num_heads, num_layers, forward_expansion, block_size = 32, 4, 2, 2, 8
    assert T <= block_size

    key = jax.random.PRNGKey(0)
    kx, kp = jax.random.split(key)
    x = jax.random.normal(kx, (B, T, embed_dim), jnp.float32)
    raw_params = [init_layer_params(k, embed_dim, forward_expansion)
                  for k in jax.random.split(kp, num_layers)]

    # weight quantization / fusion done once, outside the forward path
    prepared = prepare_params(raw_params)
    prepared = jax.tree_util.tree_map(jax.block_until_ready, prepared)

    out = transformer_encoder(x, prepared)
    out = jax.block_until_ready(out)

    ref = transformer_encoder_ref(x, prepared)
    assert out.shape == (B, T, embed_dim)
    assert jnp.allclose(out, ref, rtol=1e-3, atol=1e-3), "mismatch vs pure-JAX reference"
    print("KERNEL_OK")
</pallas_src>

<mosaic_0001>
module attributes {stable_mosaic.version = 11 : i64} {
  func.func @fused_encoder_kernel(%arg0: i32, %arg1: i32, %arg2: memref<2x5xf32, #tpu.memory_space<smem>>, %arg3: memref<1x8x32xf32, #tpu.memory_space<vmem>>, %arg4: memref<1x32x96xbf16, #tpu.memory_space<vmem>>, %arg5: memref<1x32x64xbf16, #tpu.memory_space<vmem>>, %arg6: memref<1x32x64xbf16, #tpu.memory_space<vmem>>, %arg7: memref<1x64x32xbf16, #tpu.memory_space<vmem>>, %arg8: memref<1x1x32xf32, #tpu.memory_space<vmem>>, %arg9: memref<1x1x32xf32, #tpu.memory_space<vmem>>, %arg10: memref<1x8x32xf32, #tpu.memory_space<vmem>>) attributes {dimension_semantics = [#tpu.dimension_semantics<parallel>, #tpu.dimension_semantics<arbitrary>], iteration_bounds = array<i64: 2, 2>, scalar_prefetch = 0 : i64, scratch_operands = 0 : i64, tpu.core_type = #tpu.core_type<tc>, window_params = [{transform_indices = @transform_0, window_bounds = array<i64: 2, 5>}, {transform_indices = @transform_1, window_bounds = array<i64: 1, 8, 32>}, {transform_indices = @transform_2, window_bounds = array<i64: 1, 32, 96>}, {transform_indices = @transform_3, window_bounds = array<i64: 1, 32, 64>}, {transform_indices = @transform_4, window_bounds = array<i64: 1, 32, 64>}, {transform_indices = @transform_5, window_bounds = array<i64: 1, 64, 32>}, {transform_indices = @transform_6, window_bounds = array<i64: 1, 1, 32>}, {transform_indices = @transform_7, window_bounds = array<i64: 1, 1, 32>}, {transform_indices = @transform_8, window_bounds = array<i64: 1, 8, 32>}]} {
    %c0_i32 = arith.constant 0 : i32
    %0 = arith.cmpi eq, %arg1, %c0_i32 : i32
    %1 = arith.extui %0 : i1 to i32
    %c0_i32_0 = arith.constant 0 : i32
    %2 = arith.cmpi ne, %1, %c0_i32_0 : i32
    scf.if %2 {
      %c0_60 = arith.constant 0 : index
      %c0_61 = arith.constant 0 : index
      %c0_62 = arith.constant 0 : index
      %164 = vector.load %arg3[%c0_60, %c0_61, %c0_62] : memref<1x8x32xf32, #tpu.memory_space<vmem>>, vector<1x8x32xf32>
      %c0_63 = arith.constant 0 : index
      %c0_64 = arith.constant 0 : index
      %c0_65 = arith.constant 0 : index
      %165 = vector.load %arg10[%c0_63, %c0_64, %c0_65] : memref<1x8x32xf32, #tpu.memory_space<vmem>>, vector<1x8x32xf32>
      tpu.vector_store %arg10[%c0_63, %c0_64, %c0_65], %164 {strides = array<i32>} : memref<1x8x32xf32, #tpu.memory_space<vmem>>, vector<1x8x32xf32>,
    } else {
    }
    %c0 = arith.constant 0 : index
    %c0_1 = arith.constant 0 : index
    %c0_2 = arith.constant 0 : index
    %3 = vector.load %arg10[%c0, %c0_1, %c0_2] : memref<1x8x32xf32, #tpu.memory_space<vmem>>, vector<1x8x32xf32>
    %4 = vector.shape_cast %3 : vector<1x8x32xf32> to vector<8x32xf32>
    %5 = arith.index_cast %arg1 : i32 to index
    %c0_3 = arith.constant 0 : index
    %6 = memref.load %arg2[%5, %c0_3] : memref<2x5xf32, #tpu.memory_space<smem>>
    %7 = arith.index_cast %arg1 : i32 to index
    %c1 = arith.constant 1 : index
    %8 = memref.load %arg2[%7, %c1] : memref<2x5xf32, #tpu.memory_space<smem>>
    %9 = arith.index_cast %arg1 : i32 to index
    %c2 = arith.constant 2 : index
    %10 = memref.load %arg2[%9, %c2] : memref<2x5xf32, #tpu.memory_space<smem>>
    %11 = arith.index_cast %arg1 : i32 to index
    %c3 = arith.constant 3 : index
    %12 = memref.load %arg2[%11, %c3] : memref<2x5xf32, #tpu.memory_space<smem>>
    %13 = arith.index_cast %arg1 : i32 to index
    %c4 = arith.constant 4 : index
    %14 = memref.load %arg2[%13, %c4] : memref<2x5xf32, #tpu.memory_space<smem>>
    %15 = math.absf %4 : vector<8x32xf32>
    %cst = arith.constant dense<0xFF800000> : vector<8xf32>
    %16 = vector.multi_reduction <maximumf>, %15, %cst [1] : vector<8x32xf32> to vector<8xf32>
    %17 = vector.shape_cast %16 : vector<8xf32> to vector<8x1xf32>
    %cst_4 = arith.constant 9.99999974E-6 : f32
    %18 = vector.broadcast %cst_4 : f32 to vector<8x1xf32>
    %19 = arith.maximumf %17, %18 : vector<8x1xf32>
    %cst_5 = arith.constant 1.270000e+02 : f32
    %20 = vector.broadcast %cst_5 : f32 to vector<8x1xf32>
    %21 = arith.divf %20, %19 : vector<8x1xf32>
    %22 = vector.broadcast %21 : vector<8x1xf32> to vector<8x32xf32>
    %23 = arith.mulf %4, %22 : vector<8x32xf32>
    %24 = math.roundeven %23 : vector<8x32xf32>
    %cst_6 = arith.constant -1.280000e+02 : f32
    %cst_7 = arith.constant 1.270000e+02 : f32
    %25 = vector.broadcast %cst_6 : f32 to vector<8x32xf32>
    %26 = arith.maximumf %25, %24 : vector<8x32xf32>
    %27 = vector.broadcast %cst_7 : f32 to vector<8x32xf32>
    %28 = arith.minimumf %27, %26 : vector<8x32xf32>
    %cst_8 = arith.constant 1.000000e+00 : f32
    %29 = vector.broadcast %cst_8 : f32 to vector<8x1xf32>
    %30 = arith.divf %29, %21 : vector<8x1xf32>
    %31 = arith.truncf %28 : vector<8x32xf32> to vector<8x32xbf16>
    %c0_9 = arith.constant 0 : index
    %c0_10 = arith.constant 0 : index
    %c0_11 = arith.constant 0 : index
    %32 = vector.load %arg4[%c0_9, %c0_10, %c0_11] : memref<1x32x96xbf16, #tpu.memory_space<vmem>>, vector<1x32x96xbf16>
    %33 = vector.shape_cast %32 : vector<1x32x96xbf16> to vector<32x96xbf16>
    %cst_12 = arith.constant dense<0.000000e+00> : vector<8x96xf32>
    %34 = tpu.matmul %31, %33, %cst_12 {dimension_numbers = #tpu.dot_dimension_numbers<[1], [0], [0], [1], [0, 0, 1, 1], [], []>} : vector<8x32xbf16>, vector<32x96xbf16>, vector<8x96xf32> -> vector<8x96xf32>
    %35 = vector.broadcast %30 : vector<8x1xf32> to vector<8x96xf32>
    %36 = arith.mulf %34, %35 : vector<8x96xf32>
    %37 = vector.extract_strided_slice %36 {offsets = [0, 0], sizes = [8, 32], strides = [1, 1]} : vector<8x96xf32> to vector<8x32xf32>
    %38 = vector.broadcast %6 : f32 to vector<8x32xf32>
    %39 = arith.mulf %37, %38 : vector<8x32xf32>
    %40 = vector.extract_strided_slice %36 {offsets = [0, 32], sizes = [8, 32], strides = [1, 1]} : vector<8x96xf32> to vector<8x32xf32>
    %41 = vector.broadcast %8 : f32 to vector<8x32xf32>
    %42 = arith.mulf %40, %41 : vector<8x32xf32>
    %43 = vector.extract_strided_slice %36 {offsets = [0, 64], sizes = [8, 32], strides = [1, 1]} : vector<8x96xf32> to vector<8x32xf32>
    %44 = vector.broadcast %10 : f32 to vector<8x32xf32>
    %45 = arith.mulf %43, %44 : vector<8x32xf32>
    %cst_13 = arith.constant dense<0.000000e+00> : vector<8x8xf32>
    %46 = tpu.matmul %39, %42, %cst_13 {dimension_numbers = #tpu.dot_dimension_numbers<[1], [1], [0], [0], [0, 0, 1, 0], [], []>} : vector<8x32xf32>, vector<8x32xf32>, vector<8x8xf32> -> vector<8x8xf32>
    %cst_14 = arith.constant 0.176776692 : f32
    %47 = vector.broadcast %cst_14 : f32 to vector<8x8xf32>
    %48 = arith.mulf %46, %47 : vector<8x8xf32>
    %49 = tpu.iota {dimensions = array<i32: 0>} : vector<8x8xi32>
    %50 = tpu.iota {dimensions = array<i32: 1>} : vector<8x8xi32>
    %51 = arith.cmpi sle, %50, %49 : vector<8x8xi32>
    %cst_15 = arith.constant -1.000000e+30 : f32
    %52 = vector.broadcast %cst_15 : f32 to vector<8x8xf32>
    %53 = arith.select %51, %48, %52 : vector<8x8xi1>, vector<8x8xf32>
    %cst_16 = arith.constant dense<0xFF800000> : vector<8xf32>
    %54 = vector.multi_reduction <maximumf>, %53, %cst_16 [1] : vector<8x8xf32> to vector<8xf32>
    %55 = vector.shape_cast %54 : vector<8xf32> to vector<8x1xf32>
    %56 = vector.broadcast %55 : vector<8x1xf32> to vector<8x8xf32>
    %57 = arith.subf %53, %56 : vector<8x8xf32>
    %58 = math.exp %57 : vector<8x8xf32>
    %cst_17 = arith.constant dense<0.000000e+00> : vector<8xf32>
    %59 = vector.multi_reduction <add>, %58, %cst_17 [1] : vector<8x8xf32> to vector<8xf32>
    %60 = vector.shape_cast %59 : vector<8xf32> to vector<8x1xf32>
    %61 = tpu.reciprocal %60 {approx = true} : vector<8x1xf32> -> vector<8x1xf32>
    %62 = arith.mulf %60, %61 : vector<8x1xf32>
    %cst_18 = arith.constant 2.000000e+00 : f32
    %63 = vector.broadcast %cst_18 : f32 to vector<8x1xf32>
    %64 = arith.subf %63, %62 : vector<8x1xf32>
    %65 = arith.mulf %61, %64 : vector<8x1xf32>
    %66 = vector.broadcast %65 : vector<8x1xf32> to vector<8x8xf32>
    %67 = arith.mulf %58, %66 : vector<8x8xf32>
    %cst_19 = arith.constant dense<0.000000e+00> : vector<8x32xf32>
    %68 = tpu.matmul %67, %45, %cst_19 {dimension_numbers = #tpu.dot_dimension_numbers<[1], [0], [0], [1], [0, 0, 1, 1], [], []>} : vector<8x8xf32>, vector<8x32xf32>, vector<8x32xf32> -> vector<8x32xf32>
    %69 = arith.addf %4, %68 : vector<8x32xf32>
    %c0_20 = arith.constant 0 : index
    %c0_21 = arith.constant 0 : index
    %c0_22 = arith.constant 0 : index
    %70 = vector.load %arg8[%c0_20, %c0_21, %c0_22] : memref<1x1x32xf32, #tpu.memory_space<vmem>>, vector<1x1x32xf32>
    %71 = vector.shape_cast %70 : vector<1x1x32xf32> to vector<1x32xf32>
    %72 = arith.mulf %69, %69 : vector<8x32xf32>
    %cst_23 = arith.constant dense<0.000000e+00> : vector<8xf32>
    %73 = vector.multi_reduction <add>, %72, %cst_23 [1] : vector<8x32xf32> to vector<8xf32>
    %74 = vector.shape_cast %73 : vector<8xf32> to vector<8x1xf32>
    %cst_24 = arith.constant 3.200000e+01 : f32
    %75 = vector.broadcast %cst_24 : f32 to vector<8x1xf32>
    %76 = arith.divf %74, %75 : vector<8x1xf32>
    %cst_25 = arith.constant 9.99999997E-7 : f32
    %77 = vector.broadcast %cst_25 : f32 to vector<8x1xf32>
    %78 = arith.addf %76, %77 : vector<8x1xf32>
    %79 = math.rsqrt %78 : vector<8x1xf32>
    %80 = vector.broadcast %79 : vector<8x1xf32> to vector<8x32xf32>
    %81 = arith.mulf %69, %80 : vector<8x32xf32>
    %82 = vector.broadcast %71 : vector<1x32xf32> to vector<8x32xf32>
    %83 = arith.mulf %81, %82 : vector<8x32xf32>
    %84 = math.absf %83 : vector<8x32xf32>
    %cst_26 = arith.constant dense<0xFF800000> : vector<8xf32>
    %85 = vector.multi_reduction <maximumf>, %84, %cst_26 [1] : vector<8x32xf32> to vector<8xf32>
    %86 = vector.shape_cast %85 : vector<8xf32> to vector<8x1xf32>
    %cst_27 = arith.constant 9.99999974E-6 : f32
    %87 = vector.broadcast %cst_27 : f32 to vector<8x1xf32>
    %88 = arith.maximumf %86, %87 : vector<8x1xf32>
    %cst_28 = arith.constant 1.270000e+02 : f32
    %89 = vector.broadcast %cst_28 : f32 to vector<8x1xf32>
    %90 = arith.divf %89, %88 : vector<8x1xf32>
    %91 = vector.broadcast %90 : vector<8x1xf32> to vector<8x32xf32>
    %92 = arith.mulf %83, %91 : vector<8x32xf32>
    %93 = math.roundeven %92 : vector<8x32xf32>
    %cst_29 = arith.constant -1.280000e+02 : f32
    %cst_30 = arith.constant 1.270000e+02 : f32
    %94 = vector.broadcast %cst_29 : f32 to vector<8x32xf32>
    %95 = arith.maximumf %94, %93 : vector<8x32xf32>
    %96 = vector.broadcast %cst_30 : f32 to vector<8x32xf32>
    %97 = arith.minimumf %96, %95 : vector<8x32xf32>
    %cst_31 = arith.constant 1.000000e+00 : f32
    %98 = vector.broadcast %cst_31 : f32 to vector<8x1xf32>
    %99 = arith.divf %98, %90 : vector<8x1xf32>
    %100 = arith.truncf %97 : vector<8x32xf32> to vector<8x32xbf16>
    %c0_32 = arith.constant 0 : index
    %c0_33 = arith.constant 0 : index
    %c0_34 = arith.constant 0 : index
    %101 = vector.load %arg5[%c0_32, %c0_33, %c0_34] : memref<1x32x64xbf16, #tpu.memory_space<vmem>>, vector<1x32x64xbf16>
    %102 = vector.shape_cast %101 : vector<1x32x64xbf16> to vector<32x64xbf16>
    %cst_35 = arith.constant dense<0.000000e+00> : vector<8x64xf32>
    %103 = tpu.matmul %100, %102, %cst_35 {dimension_numbers = #tpu.dot_dimension_numbers<[1], [0], [0], [1], [0, 0, 1, 1], [], []>} : vector<8x32xbf16>, vector<32x64xbf16>, vector<8x64xf32> -> vector<8x64xf32>
    %104 = vector.broadcast %99 : vector<8x1xf32> to vector<8x64xf32>
    %105 = arith.mulf %103, %104 : vector<8x64xf32>
    %106 = vector.broadcast %12 : f32 to vector<8x64xf32>
    %107 = arith.mulf %105, %106 : vector<8x64xf32>
    %c0_36 = arith.constant 0 : index
    %c0_37 = arith.constant 0 : index
    %c0_38 = arith.constant 0 : index
    %108 = vector.load %arg6[%c0_36, %c0_37, %c0_38] : memref<1x32x64xbf16, #tpu.memory_space<vmem>>, vector<1x32x64xbf16>
    %109 = vector.shape_cast %108 : vector<1x32x64xbf16> to vector<32x64xbf16>
    %cst_39 = arith.constant dense<0.000000e+00> : vector<8x64xf32>
    %110 = tpu.matmul %100, %109, %cst_39 {dimension_numbers = #tpu.dot_dimension_numbers<[1], [0], [0], [1], [0, 0, 1, 1], [], []>} : vector<8x32xbf16>, vector<32x64xbf16>, vector<8x64xf32> -> vector<8x64xf32>
    %111 = vector.broadcast %99 : vector<8x1xf32> to vector<8x64xf32>
    %112 = arith.mulf %110, %111 : vector<8x64xf32>
    %113 = vector.broadcast %12 : f32 to vector<8x64xf32>
    %114 = arith.mulf %112, %113 : vector<8x64xf32>
    %115 = arith.negf %114 : vector<8x64xf32>
    %116 = math.exp %115 : vector<8x64xf32>
    %cst_40 = arith.constant 1.000000e+00 : f32
    %117 = vector.broadcast %cst_40 : f32 to vector<8x64xf32>
    %118 = arith.addf %117, %116 : vector<8x64xf32>
    %119 = arith.divf %117, %118 : vector<8x64xf32>
    %120 = arith.mulf %114, %119 : vector<8x64xf32>
    %121 = arith.mulf %107, %120 : vector<8x64xf32>
    %122 = math.absf %121 : vector<8x64xf32>
    %cst_41 = arith.constant dense<0xFF800000> : vector<8xf32>
    %123 = vector.multi_reduction <maximumf>, %122, %cst_41 [1] : vector<8x64xf32> to vector<8xf32>
    %124 = vector.shape_cast %123 : vector<8xf32> to vector<8x1xf32>
    %cst_42 = arith.constant 9.99999974E-6 : f32
    %125 = vector.broadcast %cst_42 : f32 to vector<8x1xf32>
    %126 = arith.maximumf %124, %125 : vector<8x1xf32>
    %cst_43 = arith.constant 1.270000e+02 : f32
    %127 = vector.broadcast %cst_43 : f32 to vector<8x1xf32>
    %128 = arith.divf %127, %126 : vector<8x1xf32>
    %129 = vector.broadcast %128 : vector<8x1xf32> to vector<8x64xf32>
    %130 = arith.mulf %121, %129 : vector<8x64xf32>
    %131 = math.roundeven %130 : vector<8x64xf32>
    %cst_44 = arith.constant -1.280000e+02 : f32
    %cst_45 = arith.constant 1.270000e+02 : f32
    %132 = vector.broadcast %cst_44 : f32 to vector<8x64xf32>
    %133 = arith.maximumf %132, %131 : vector<8x64xf32>
    %134 = vector.broadcast %cst_45 : f32 to vector<8x64xf32>
    %135 = arith.minimumf %134, %133 : vector<8x64xf32>
    %cst_46 = arith.constant 1.000000e+00 : f32
    %136 = vector.broadcast %cst_46 : f32 to vector<8x1xf32>
    %137 = arith.divf %136, %128 : vector<8x1xf32>
    %138 = arith.truncf %135 : vector<8x64xf32> to vector<8x64xbf16>
    %c0_47 = arith.constant 0 : index
    %c0_48 = arith.constant 0 : index
    %c0_49 = arith.constant 0 : index
    %139 = vector.load %arg7[%c0_47, %c0_48, %c0_49] : memref<1x64x32xbf16, #tpu.memory_space<vmem>>, vector<1x64x32xbf16>
    %140 = vector.shape_cast %139 : vector<1x64x32xbf16> to vector<64x32xbf16>
    %cst_50 = arith.constant dense<0.000000e+00> : vector<8x32xf32>
    %141 = tpu.matmul %138, %140, %cst_50 {dimension_numbers = #tpu.dot_dimension_numbers<[1], [0], [0], [1], [0, 0, 1, 1], [], []>} : vector<8x64xbf16>, vector<64x32xbf16>, vector<8x32xf32> -> vector<8x32xf32>
    %142 = vector.broadcast %137 : vector<8x1xf32> to vector<8x32xf32>
    %143 = arith.mulf %141, %142 : vector<8x32xf32>
    %144 = vector.broadcast %14 : f32 to vector<8x32xf32>
    %145 = arith.mulf %143, %144 : vector<8x32xf32>
    %146 = arith.addf %83, %145 : vector<8x32xf32>
    %c0_51 = arith.constant 0 : index
    %c0_52 = arith.constant 0 : index
    %c0_53 = arith.constant 0 : index
    %147 = vector.load %arg9[%c0_51, %c0_52, %c0_53] : memref<1x1x32xf32, #tpu.memory_space<vmem>>, vector<1x1x32xf32>
    %148 = vector.shape_cast %147 : vector<1x1x32xf32> to vector<1x32xf32>
    %149 = arith.mulf %146, %146 : vector<8x32xf32>
    %cst_54 = arith.constant dense<0.000000e+00> : vector<8xf32>
    %150 = vector.multi_reduction <add>, %149, %cst_54 [1] : vector<8x32xf32> to vector<8xf32>
    %151 = vector.shape_cast %150 : vector<8xf32> to vector<8x1xf32>
    %cst_55 = arith.constant 3.200000e+01 : f32
    %152 = vector.broadcast %cst_55 : f32 to vector<8x1xf32>
    %153 = arith.divf %151, %152 : vector<8x1xf32>
    %cst_56 = arith.constant 9.99999997E-7 : f32
    %154 = vector.broadcast %cst_56 : f32 to vector<8x1xf32>
    %155 = arith.addf %153, %154 : vector<8x1xf32>
    %156 = math.rsqrt %155 : vector<8x1xf32>
    %157 = vector.broadcast %156 : vector<8x1xf32> to vector<8x32xf32>
    %158 = arith.mulf %146, %157 : vector<8x32xf32>
    %159 = vector.broadcast %148 : vector<1x32xf32> to vector<8x32xf32>
    %160 = arith.mulf %158, %159 : vector<8x32xf32>
    %c0_57 = arith.constant 0 : index
    %c0_58 = arith.constant 0 : index
    %c0_59 = arith.constant 0 : index
    %161 = vector.load %arg10[%c0_57, %c0_58, %c0_59] : memref<1x8x32xf32, #tpu.memory_space<vmem>>, vector<1x8x32xf32>
    %162 = vector.shape_cast %161 : vector<1x8x32xf32> to vector<8x32xf32>
    %163 = vector.shape_cast %160 : vector<8x32xf32> to vector<1x8x32xf32>
    tpu.vector_store %arg10[%c0_57, %c0_58, %c0_59], %163 {strides = array<i32>} : memref<1x8x32xf32, #tpu.memory_space<vmem>>, vector<1x8x32xf32>,
    return
  }
  func.func @transform_0(%arg0: i32, %arg1: i32) -> (i32, i32) {
    %c0_i32 = arith.constant 0 : i32
    %c0_i32_0 = arith.constant 0 : i32
    %c0_i32_1 = arith.constant 0 : i32
    return %c0_i32, %c0_i32_0 : i32, i32
  }
  func.func @transform_1(%arg0: i32, %arg1: i32) -> (i32, i32, i32) {
    %c0_i32 = arith.constant 0 : i32
    %c0_i32_0 = arith.constant 0 : i32
    %c0_i32_1 = arith.constant 0 : i32
    return %arg0, %c0_i32, %c0_i32_0 : i32, i32, i32
  }
  func.func @transform_2(%arg0: i32, %arg1: i32) -> (i32, i32, i32) {
    %c0_i32 = arith.constant 0 : i32
    %c0_i32_0 = arith.constant 0 : i32
    %c0_i32_1 = arith.constant 0 : i32
    return %arg1, %c0_i32, %c0_i32_0 : i32, i32, i32
  }
  func.func @transform_3(%arg0: i32, %arg1: i32) -> (i32, i32, i32) {
    %c0_i32 = arith.constant 0 : i32
    %c0_i32_0 = arith.constant 0 : i32
    %c0_i32_1 = arith.constant 0 : i32
    return %arg1, %c0_i32, %c0_i32_0 : i32, i32, i32
  }
  func.func @transform_4(%arg0: i32, %arg1: i32) -> (i32, i32, i32) {
    %c0_i32 = arith.constant 0 : i32
    %c0_i32_0 = arith.constant 0 : i32
    %c0_i32_1 = arith.constant 0 : i32
    return %arg1, %c0_i32, %c0_i32_0 : i32, i32, i32
  }
  func.func @transform_5(%arg0: i32, %arg1: i32) -> (i32, i32, i32) {
    %c0_i32 = arith.constant 0 : i32
    %c0_i32_0 = arith.constant 0 : i32
    %c0_i32_1 = arith.constant 0 : i32
    return %arg1, %c0_i32, %c0_i32_0 : i32, i32, i32
  }
  func.func @transform_6(%arg0: i32, %arg1: i32) -> (i32, i32, i32) {
    %c0_i32 = arith.constant 0 : i32
    %c0_i32_0 = arith.constant 0 : i32
    %c0_i32_1 = arith.constant 0 : i32
    return %arg1, %c0_i32, %c0_i32_0 : i32, i32, i32
  }
  func.func @transform_7(%arg0: i32, %arg1: i32) -> (i32, i32, i32) {
    %c0_i32 = arith.constant 0 : i32
    %c0_i32_0 = arith.constant 0 : i32
    %c0_i32_1 = arith.constant 0 : i32
    return %arg1, %c0_i32, %c0_i32_0 : i32, i32, i32
  }
  func.func @transform_8(%arg0: i32, %arg1: i32) -> (i32, i32, i32) {
    %c0_i32 = arith.constant 0 : i32
    %c0_i32_0 = arith.constant 0 : i32
    %c0_i32_1 = arith.constant 0 : i32
    return %arg0, %c0_i32, %c0_i32_0 : i32, i32, i32
  }
}

</mosaic_0001>

<llo_original>
// kernel: tpu_custom_call.1
$region0: #{tpu_custom_call.1}
  #allocation0 [shape = 'u32[]', space=smem, size = 0x4, offset = 0x4, fixed_abs, tag = 'smem constant byte address 0x4 - core index']
  #allocation1 [shape = 'u32[144,128]{1,0:T(1,128)}', space=vmem, size = 0x12000, scoped, tag = 'internal scratch']
  %s0 = inlined_call_operand.hbm [shape: f32[2,5], index: 0, kind: input, shape index: {}]
  %s1 = inlined_call_operand.hbm [shape: f32[2,8,32], index: 1, kind: input, shape index: {}]
  %s2 = inlined_call_operand.vmem [shape: bf16[2,32,96], index: 2, kind: input, shape index: {}]
  %s3 = inlined_call_operand.vmem [shape: bf16[2,32,64], index: 3, kind: input, shape index: {}]
  %s4 = inlined_call_operand.vmem [shape: bf16[2,32,64], index: 4, kind: input, shape index: {}]
  %s5 = inlined_call_operand.vmem [shape: bf16[2,64,32], index: 5, kind: input, shape index: {}]
  %s6 = inlined_call_operand.vmem [shape: f32[2,1,32], index: 6, kind: input, shape index: {}]
  %s7 = inlined_call_operand.vmem [shape: f32[2,1,32], index: 7, kind: input, shape index: {}]
  %s8 = inlined_call_operand.hbm [shape: f32[2,8,32], index: 8, kind: output, shape index: {}]
  %s9 = sld [smem:[#allocation0]]
  $region77: #{tpu_custom_call.1} parent=0
    _
  %s11 = ssub.s32 1, %s9
  %s12 = scalar_select 0, %s11, %s9
  $region1: #{tpu_custom_call.1} parent=0
    #allocation2 [shape = 'u8[1024]{0}', space=smem, size = 0x400, scoped, tag = 'input window, operand 0, single buffered']
    #allocation3 [shape = 's32[2]{0}', space=sflag, size = 0x8, scoped, tag = 'scoped memory for tpu_custom_call.1']
    #allocation4 [shape = 's32[2]{0}', space=sflag, size = 0x8, scoped, tag = 'scoped memory for tpu_custom_call.1']
    #allocation5 [shape = 's32[2]{0}', space=sflag, size = 0x8, scoped, tag = 'scoped memory for tpu_custom_call.1']
    #allocation6 [shape = 'u8[8192]{0}', space=vmem, size = 0x2000, scoped, tag = 'input window, operand 1']
    #allocation7 [shape = 'u8[8192]{0}', space=vmem, size = 0x2000, scoped, tag = 'output window, operand 0']
    %13 = vsyncpa [#allocation5], 0
    %14 = vsyncpa [#allocation3], 0
    %s15 = scalar_lea.sflag [#allocation3], 1
    %16 = vsyncpa %s15, 0
    %17 = vsyncpa [#allocation4], 0
    %s18 = scalar_lea.sflag [#allocation4], 1
    %19 = vsyncpa %s18, 0
    loop: start=0, step=1, limit=6
    $region2: #{tpu_custom_call.1} parent=1 // loop_pre_header
      _
    $region3: #{tpu_custom_call.1} parent=1 // loop_header
      %s21 = sphi 0, %s25
      %p22 = scmp.ge.s32.totalorder %s21, 6
      %s28 = sphi 0, %s40
      %s29 = sphi 0, %s36
      %s30 = sphi 0, %s28
      %s31 = sphi 0, %s29
      %s32 = sphi 0, %s30
      %s33 = sphi 0, %s31
      %s41 = sphi 0, %s41
      %s43 = sphi 0, %s41
      %s44 = sphi 0, %s43
      %s58 = sphi 0, %s44
      %s64 = sphi 0, %s66
      %s67 = sphi 0, %s64
      %s68 = sphi 0, %s67
      %s84 = sphi 0, %s68
      %s90 = sphi 0, %s92
      %s93 = sphi 0, %s90
      %s94 = sphi 0, %s93
      %s110 = sphi 0, %s94
      %s116 = sphi 0, %s118
      %s119 = sphi 0, %s116
      %s120 = sphi 0, %s119
      %s136 = sphi 0, %s120
      %s142 = sphi 0, %s144
      %s145 = sphi 0, %s142
      %s146 = sphi 0, %s145
      %s162 = sphi 0, %s146
      %s168 = sphi 0, %s170
      %s171 = sphi 0, %s168
      %s172 = sphi 0, %s171
      %s188 = sphi 0, %s172
      %s194 = sphi 0, %s196
      %s197 = sphi 0, %s194
      %s198 = sphi 0, %s197
      %s214 = sphi 0, %s198
      %s220 = sphi 0, %s222
      %s223 = sphi 0, %s220
      %s224 = sphi 0, %s223
      %s240 = sphi 0, %s224
      %s246 = sphi 0, %s248
      %s249 = sphi 0, %s246
      %s250 = sphi 0, %s249
      %s266 = sphi 0, %s250
    $region4: #{tpu_custom_call.1} parent=1 // loop_header_branch
      %24 = sbr.rel (%p22) target = $region8
    $region5: #{tpu_custom_call.1} parent=1 // loop_body
      %s26 = ssub.s32 %s21, 1
      %s27 = ssub.s32 %s21, 2
      %s34 = sadd.s32 1, %s29
      %p35 = scmp.ge.s32.totalorder %s34, 2
      %s36 = scalar_select %p35, 0, %s34
      %s37 = sadd.s32 1, %s28
      %s38 = scalar_select %p35, %s37, %s28
      %p39 = scmp.ge.s32.totalorder %s38, 2
      %s40 = scalar_select %p39, 0, %s38
      %s42 = sadd.s32 %s41, 1
      %p45 = scmp.eq.s32.totalorder %s21, 3
      %p46 = scmp.ne.s32.totalorder %s41, %s43
      %p47 = scmp.eq.s32.totalorder %s21, 0
      %p48 = por %p46, %p47
      %p49 = scmp.ne.s32.totalorder %s41, %s43
      %p50 = scmp.eq.s32.totalorder %s26, 3
      %p51 = por %p49, %p50
      %p52 = scmp.ne.s32.totalorder %s43, %s44
      %p53 = scmp.eq.s32.totalorder %s26, 0
      %p54 = por %p52, %p53
      %p55 = scmp.ne.s32.totalorder %s43, %s44
      %p56 = scmp.eq.s32.totalorder %s27, 3
      %p57 = por %p55, %p56
      %p59 = scmp.ne.s32.totalorder %s44, %s58
      %p60 = scmp.eq.s32.totalorder %s27, 0
      %p61 = por %p59, %p60
      %s62 = ssub.s32 %s28, %s40
      %p63 = scmp.eq.s32.totalorder %s62, 0
      %s65 = sadd.s32 %s64, 1
      %s66 = scalar_select %p63, %s64, %s65
      %p69 = pneg %p63
      %p70 = scmp.eq.s32.totalorder %s21, 3
      %p71 = por %p69, %p70
      %p72 = scmp.ne.s32.totalorder %s64, %s67
      %p73 = scmp.eq.s32.totalorder %s21, 0
      %p74 = por %p72, %p73
      %p75 = scmp.ne.s32.totalorder %s64, %s67
      %p76 = scmp.eq.s32.totalorder %s26, 3
      %p77 = por %p75, %p76
      %p78 = scmp.ne.s32.totalorder %s67, %s68
      %p79 = scmp.eq.s32.totalorder %s26, 0
      %p80 = por %p78, %p79
      %p81 = scmp.ne.s32.totalorder %s67, %s68
      %p82 = scmp.eq.s32.totalorder %s27, 3
      %p83 = por %p81, %p82
      %p85 = scmp.ne.s32.totalorder %s68, %s84
      %p86 = scmp.eq.s32.totalorder %s27, 0
      %p87 = por %p85, %p86
      %s88 = ssub.s32 %s29, %s36
      %p89 = scmp.eq.s32.totalorder %s88, 0
      %s91 = sadd.s32 %s90, 1
      %s92 = scalar_select %p89, %s90, %s91
      %p95 = pneg %p89
      %p96 = scmp.eq.s32.totalorder %s21, 3
      %p97 = por %p95, %p96
      %p98 = scmp.ne.s32.totalorder %s90, %s93
      %p99 = scmp.eq.s32.totalorder %s21, 0
      %p100 = por %p98, %p99
      %p101 = scmp.ne.s32.totalorder %s90, %s93
      %p102 = scmp.eq.s32.totalorder %s26, 3
      %p103 = por %p101, %p102
      %p104 = scmp.ne.s32.totalorder %s93, %s94
      %p105 = scmp.eq.s32.totalorder %s26, 0
      %p106 = por %p104, %p105
      %p107 = scmp.ne.s32.totalorder %s93, %s94
      %p108 = scmp.eq.s32.totalorder %s27, 3
      %p109 = por %p107, %p108
      %p111 = scmp.ne.s32.totalorder %s94, %s110
      %p112 = scmp.eq.s32.totalorder %s27, 0
      %p113 = por %p111, %p112
      %s114 = ssub.s32 %s29, %s36
      %p115 = scmp.eq.s32.totalorder %s114, 0
      %s117 = sadd.s32 %s116, 1
      %s118 = scalar_select %p115, %s116, %s117
      %p121 = pneg %p115
      %p122 = scmp.eq.s32.totalorder %s21, 3
      %p123 = por %p121, %p122
      %p124 = scmp.ne.s32.totalorder %s116, %s119
      %p125 = scmp.eq.s32.totalorder %s21, 0
      %p126 = por %p124, %p125
      %p127 = scmp.ne.s32.totalorder %s116, %s119
      %p128 = scmp.eq.s32.totalorder %s26, 3
      %p129 = por %p127, %p128
      %p130 = scmp.ne.s32.totalorder %s119, %s120
      %p131 = scmp.eq.s32.totalorder %s26, 0
      %p132 = por %p130, %p131
      %p133 = scmp.ne.s32.totalorder %s119, %s120
      %p134 = scmp.eq.s32.totalorder %s27, 3
      %p135 = por %p133, %p134
      %p137 = scmp.ne.s32.totalorder %s120, %s136
      %p138 = scmp.eq.s32.totalorder %s27, 0
      %p139 = por %p137, %p138
      %s140 = ssub.s32 %s29, %s36
      %p141 = scmp.eq.s32.totalorder %s140, 0
      %s143 = sadd.s32 %s142, 1
      %s144 = scalar_select %p141, %s142, %s143
      %p147 = pneg %p141
      %p148 = scmp.eq.s32.totalorder %s21, 3
      %p149 = por %p147, %p148
      %p150 = scmp.ne.s32.totalorder %s142, %s145
      %p151 = scmp.eq.s32.totalorder %s21, 0
      %p152 = por %p150, %p151
      %p153 = scmp.ne.s32.totalorder %s142, %s145
      %p154 = scmp.eq.s32.totalorder %s26, 3
      %p155 = por %p153, %p154
      %p156 = scmp.ne.s32.totalorder %s145, %s146
      %p157 = scmp.eq.s32.totalorder %s26, 0
      %p158 = por %p156, %p157
      %p159 = scmp.ne.s32.totalorder %s145, %s146
      %p160 = scmp.eq.s32.totalorder %s27, 3
      %p161 = por %p159, %p160
      %p163 = scmp.ne.s32.totalorder %s146, %s162
      %p164 = scmp.eq.s32.totalorder %s27, 0
      %p165 = por %p163, %p164
      %s166 = ssub.s32 %s29, %s36
      %p167 = scmp.eq.s32.totalorder %s166, 0
      %s169 = sadd.s32 %s168, 1
      %s170 = scalar_select %p167, %s168, %s169
      %p173 = pneg %p167
      %p174 = scmp.eq.s32.totalorder %s21, 3
      %p175 = por %p173, %p174
      %p176 = scmp.ne.s32.totalorder %s168, %s171
      %p177 = scmp.eq.s32.totalorder %s21, 0
      %p178 = por %p176, %p177
      %p179 = scmp.ne.s32.totalorder %s168, %s171
      %p180 = scmp.eq.s32.totalorder %s26, 3
      %p181 = por %p179, %p180
      %p182 = scmp.ne.s32.totalorder %s171, %s172
      %p183 = scmp.eq.s32.totalorder %s26, 0
      %p184 = por %p182, %p183
      %p185 = scmp.ne.s32.totalorder %s171, %s172
      %p186 = scmp.eq.s32.totalorder %s27, 3
      %p187 = por %p185, %p186
      %p189 = scmp.ne.s32.totalorder %s172, %s188
      %p190 = scmp.eq.s32.totalorder %s27, 0
      %p191 = por %p189, %p190
      %s192 = ssub.s32 %s29, %s36
      %p193 = scmp.eq.s32.totalorder %s192, 0
      %s195 = sadd.s32 %s194, 1
      %s196 = scalar_select %p193, %s194, %s195
      %p199 = pneg %p193
      %p200 = scmp.eq.s32.totalorder %s21, 3
      %p201 = por %p199, %p200
      %p202 = scmp.ne.s32.totalorder %s194, %s197
      %p203 = scmp.eq.s32.totalorder %s21, 0
      %p204 = por %p202, %p203
      %p205 = scmp.ne.s32.totalorder %s194, %s197
      %p206 = scmp.eq.s32.totalorder %s26, 3
      %p207 = por %p205, %p206
      %p208 = scmp.ne.s32.totalorder %s197, %s198
      %p209 = scmp.eq.s32.totalorder %s26, 0
      %p210 = por %p208, %p209
      %p211 = scmp.ne.s32.totalorder %s197, %s198
      %p212 = scmp.eq.s32.totalorder %s27, 3
      %p213 = por %p211, %p212
      %p215 = scmp.ne.s32.totalorder %s198, %s214
      %p216 = scmp.eq.s32.totalorder %s27, 0
      %p217 = por %p215, %p216
      %s218 = ssub.s32 %s29, %s36
      %p219 = scmp.eq.s32.totalorder %s218, 0
      %s221 = sadd.s32 %s220, 1
      %s222 = scalar_select %p219, %s220, %s221
      %p225 = pneg %p219
      %p226 = scmp.eq.s32.totalorder %s21, 3
      %p227 = por %p225, %p226
      %p228 = scmp.ne.s32.totalorder %s220, %s223
      %p229 = scmp.eq.s32.totalorder %s21, 0
      %p230 = por %p228, %p229
      %p231 = scmp.ne.s32.totalorder %s220, %s223
      %p232 = scmp.eq.s32.totalorder %s26, 3
      %p233 = por %p231, %p232
      %p234 = scmp.ne.s32.totalorder %s223, %s224
      %p235 = scmp.eq.s32.totalorder %s26, 0
      %p236 = por %p234, %p235
      %p237 = scmp.ne.s32.totalorder %s223, %s224
      %p238 = scmp.eq.s32.totalorder %s27, 3
      %p239 = por %p237, %p238
      %p241 = scmp.ne.s32.totalorder %s224, %s240
      %p242 = scmp.eq.s32.totalorder %s27, 0
      %p243 = por %p241, %p242
      %s244 = ssub.s32 %s28, %s40
      %p245 = scmp.eq.s32.totalorder %s244, 0
      %s247 = sadd.s32 %s246, 1
      %s248 = scalar_select %p245, %s246, %s247
      %p251 = pneg %p245
      %p252 = scmp.eq.s32.totalorder %s21, 3
      %p253 = por %p251, %p252
      %p254 = scmp.ne.s32.totalorder %s246, %s249
      %p255 = scmp.eq.s32.totalorder %s21, 0
      %p256 = por %p254, %p255
      %p257 = scmp.ne.s32.totalorder %s246, %s249
      %p258 = scmp.eq.s32.totalorder %s26, 3
      %p259 = por %p257, %p258
      %p260 = scmp.ne.s32.totalorder %s249, %s250
      %p261 = scmp.eq.s32.totalorder %s26, 0
      %p262 = por %p260, %p261
      %p263 = scmp.ne.s32.totalorder %s249, %s250
      %p264 = scmp.eq.s32.totalorder %s27, 3
      %p265 = por %p263, %p264
      %p267 = scmp.ne.s32.totalorder %s250, %s266
      %p268 = scmp.eq.s32.totalorder %s27, 0
      %p269 = por %p267, %p268
      %p270 = scmp.le.s32.totalorder 1, %s21
      %p271 = scmp.lt.s32.totalorder %s21, 5
      %p272 = pnand %p270, %p271
      %p273 = pneg %p272
      // Predicated region
      $region9: #{tpu_custom_call.1} parent=5 // pred_check
        _
      $region10: #{tpu_custom_call.1} parent=5 // pred_check_branch
        %275 = sbr.rel (%p272) target = $region12
      $region11: #{tpu_custom_call.1} parent=5 // pred_region
        %s276 = ssub.s32 %s21, 1
        // Predicated region
        $region13: #{tpu_custom_call.1} parent=11 // pred_check
          %p277 = pneg %p54
        $region14: #{tpu_custom_call.1} parent=11 // pred_check_branch
          %279 = sbr.rel (%p277) target = $region16
        $region15: #{tpu_custom_call.1} parent=11 // pred_region
          %s281 = ssub.s32 32, 32
          %282 = vsyncadd [#allocation5], %s281
          %285 = dma.hbm_to_smem %s0, 32, [#allocation2], [#allocation5]
        $region16: #{tpu_custom_call.1} parent=11 // pred_fallthru
          _
      $region12: #{tpu_custom_call.1} parent=5 // pred_fallthru
        _
      %p286 = scmp.lt.s32.totalorder %s21, 4
      // Predicated region
      $region17: #{tpu_custom_call.1} parent=5 // pred_check
        %p287 = pneg %p286
      $region18: #{tpu_custom_call.1} parent=5 // pred_check_branch
        %289 = sbr.rel (%p287) target = $region20
      $region19: #{tpu_custom_call.1} parent=5 // pred_region
        // Predicated region
        $region21: #{tpu_custom_call.1} parent=19 // pred_check
          %p290 = pneg %p74
        $region22: #{tpu_custom_call.1} parent=19 // pred_check_branch
          %292 = sbr.rel (%p290) target = $region24
        $region23: #{tpu_custom_call.1} parent=19 // pred_region
          %s293 = sand.u32 %s64, 1
          %s294 = scalar_lea.sflag [#allocation3], %s293
          %s295 = sand.u32 %s64, 1
          %s296 = smul.addr %s295, 8
          %s297 = scalar_lea.vmem [#allocation6], %s296
          %s299 = ssub.s32 128, 128
          %300 = vsyncadd %s294, %s299
          %s301 = smul.addr %s28, 128
          %s302 = scalar_lea.hbm %s1, %s301
          %s304 = sshll.u32 %s297, 4
          %s305 = int_to_ptr.vmem [resolvable:$true] %s304
          %307 = dma.hbm_to_vmem [thread:$0]  %s302, 128, %s305, %s294
        $region24: #{tpu_custom_call.1} parent=19 // pred_fallthru
          _
        // Predicated region
        $region25: #{tpu_custom_call.1} parent=19 // pred_check
          %p308 = pneg %p100
        $region26: #{tpu_custom_call.1} parent=19 // pred_check_branch
          %310 = sbr.rel (%p308) target = $region28
        $region27: #{tpu_custom_call.1} parent=19 // pred_region
          %p311 = scmp.lt.s32.totalorder %s29, 1
          %s312 = scalar_select %p311, %s29, 1
          %s313 = smul.addr %s312, 4
          %s314 = smul.addr %s313, 4
          %s315 = scalar_lea.vmem %s2, %s314
        $region28: #{tpu_custom_call.1} parent=19 // pred_fallthru
          _
        // Predicated region
        $region29: #{tpu_custom_call.1} parent=19 // pred_check
          %p316 = pneg %p126
        $region30: #{tpu_custom_call.1} parent=19 // pred_check_branch
          %318 = sbr.rel (%p316) target = $region32
        $region31: #{tpu_custom_call.1} parent=19 // pred_region
          %p319 = scmp.lt.s32.totalorder %s29, 1
          %s320 = scalar_select %p319, %s29, 1
          %s321 = smul.addr %s320, 4
          %s322 = smul.addr %s321, 4
          %s323 = scalar_lea.vmem %s3, %s322
        $region32: #{tpu_custom_call.1} parent=19 // pred_fallthru
          _
        // Predicated region
        $region33: #{tpu_custom_call.1} parent=19 // pred_check
          %p324 = pneg %p152
        $region34: #{tpu_custom_call.1} parent=19 // pred_check_branch
          %326 = sbr.rel (%p324) target = $region36
        $region35: #{tpu_custom_call.1} parent=19 // pred_region
          %p327 = scmp.lt.s32.totalorder %s29, 1
          %s328 = scalar_select %p327, %s29, 1
          %s329 = smul.addr %s328, 4
          %s330 = smul.addr %s329, 4
          %s331 = scalar_lea.vmem %s4, %s330
        $region36: #{tpu_custom_call.1} parent=19 // pred_fallthru
          _
        // Predicated region
        $region37: #{tpu_custom_call.1} parent=19 // pred_check
          %p332 = pneg %p178
        $region38: #{tpu_custom_call.1} parent=19 // pred_check_branch
          %334 = sbr.rel (%p332) target = $region40
        $region39: #{tpu_custom_call.1} parent=19 // pred_region
          %p335 = scmp.lt.s32.totalorder %s29, 1
          %s336 = scalar_select %p335, %s29, 1
          %s337 = smul.addr %s336, 8
          %s338 = smul.addr %s337, 4
          %s339 = scalar_lea.vmem %s5, %s338
        $region40: #{tpu_custom_call.1} parent=19 // pred_fallthru
          _
        // Predicated region
        $region41: #{tpu_custom_call.1} parent=19 // pred_check
          %p340 = pneg %p204
        $region42: #{tpu_custom_call.1} parent=19 // pred_check_branch
          %342 = sbr.rel (%p340) target = $region44
        $region43: #{tpu_custom_call.1} parent=19 // pred_region
          %p343 = scmp.lt.s32.totalorder %s29, 1
          %s344 = scalar_select %p343, %s29, 1
          %s345 = scalar_lea.vmem %s6, %s344
        $region44: #{tpu_custom_call.1} parent=19 // pred_fallthru
          _
        // Predicated region
        $region45: #{tpu_custom_call.1} parent=19 // pred_check
          %p346 = pneg %p230
        $region46: #{tpu_custom_call.1} parent=19 // pred_check_branch
          %348 = sbr.rel (%p346) target = $region48
        $region47: #{tpu_custom_call.1} parent=19 // pred_region
          %p349 = scmp.lt.s32.totalorder %s29, 1
          %s350 = scalar_select %p349, %s29, 1
          %s351 = scalar_lea.vmem %s7, %s350
        $region48: #{tpu_custom_call.1} parent=19 // pred_fallthru
          _
      $region20: #{tpu_custom_call.1} parent=5 // pred_fallthru
        _
      %p352 = scmp.le.s32.totalorder 1, %s21
      %p353 = scmp.lt.s32.totalorder %s21, 5
      %p354 = pnand %p352, %p353
      %p355 = pneg %p354
      // Predicated region
      $region49: #{tpu_custom_call.1} parent=5 // pred_check
        _
      $region50: #{tpu_custom_call.1} parent=5 // pred_check_branch
        %357 = sbr.rel (%p354) target = $region52
      $region51: #{tpu_custom_call.1} parent=5 // pred_region
        %s358 = ssub.s32 %s21, 1
        // Predicated region
        $region53: #{tpu_custom_call.1} parent=51 // pred_check
          %p359 = pneg %p54
        $region54: #{tpu_custom_call.1} parent=51 // pred_check_branch
          %361 = sbr.rel (%p359) target = $region56
        $region55: #{tpu_custom_call.1} parent=51 // pred_region
          %362 = dma.done [#allocation5], 32
        $region56: #{tpu_custom_call.1} parent=51 // pred_fallthru
          _
        %s363 = sand.u32 %s67, 1
        %s364 = scalar_lea.sflag [#allocation3], %s363
        %s365 = sand.u32 %s67, 1
        %s366 = smul.addr %s365, 8
        %s367 = scalar_lea.vmem [#allocation6], %s366
        // Predicated region
        $region57: #{tpu_custom_call.1} parent=51 // pred_check
          %p368 = pneg %p80
        $region58: #{tpu_custom_call.1} parent=51 // pred_check_branch
          %370 = sbr.rel (%p368) target = $region60
        $region59: #{tpu_custom_call.1} parent=51 // pred_region
          %371 = dma.done %s364, 128
        $region60: #{tpu_custom_call.1} parent=51 // pred_fallthru
          _
        %372 = sfence
        %p373 = pneg %p54
        %p374 = pneg %p51
        %s375 = sand.u32 %s67, 1
        %s376 = scalar_lea.sflag [#allocation3], %s375
        %s377 = sand.u32 %s67, 1
        %s378 = smul.addr %s377, 8
        %s379 = scalar_lea.vmem [#allocation6], %s378
        %p380 = pneg %p80
        %p381 = pneg %p77
        %p382 = scmp.lt.s32.totalorder %s31, 1
        %s383 = scalar_select %p382, %s31, 1
        %s384 = smul.addr %s383, 4
        %s385 = smul.addr %s384, 4
        %s386 = scalar_lea.vmem %s2, %s385
        %p387 = pneg %p106
        %p388 = pneg %p103
        %p389 = scmp.lt.s32.totalorder %s31, 1
        %s390 = scalar_select %p389, %s31, 1
        %s391 = smul.addr %s390, 4
        %s392 = smul.addr %s391, 4
        %s393 = scalar_lea.vmem %s3, %s392
        %p394 = pneg %p132
        %p395 = pneg %p129
        %p396 = scmp.lt.s32.totalorder %s31, 1
        %s397 = scalar_select %p396, %s31, 1
        %s398 = smul.addr %s397, 4
        %s399 = smul.addr %s398, 4
        %s400 = scalar_lea.vmem %s4, %s399
        %p401 = pneg %p158
        %p402 = pneg %p155
        %p403 = scmp.lt.s32.totalorder %s31, 1
        %s404 = scalar_select %p403, %s31, 1
        %s405 = smul.addr %s404, 8
        %s406 = smul.addr %s405, 4
        %s407 = scalar_lea.vmem %s5, %s406
        %p408 = pneg %p184
        %p409 = pneg %p181
        %p410 = scmp.lt.s32.totalorder %s31, 1
        %s411 = scalar_select %p410, %s31, 1
        %s412 = scalar_lea.vmem %s6, %s411
        %p413 = pneg %p210
        %p414 = pneg %p207
        %p415 = scmp.lt.s32.totalorder %s31, 1
        %s416 = scalar_select %p415, %s31, 1
        %s417 = scalar_lea.vmem %s7, %s416
        %p418 = pneg %p236
        %p419 = pneg %p233
        %p420 = pneg %p262
        %p421 = pneg %p259
        %s422 = sand.u32 %s249, 1
        %s423 = scalar_lea.sflag [#allocation4], %s422
        %s424 = sand.u32 %s249, 1
        %s425 = smul.addr %s424, 8
        %s426 = scalar_lea.vmem [#allocation7], %s425
        %p427 = scmp.lt.s32.totalorder %s31, 1
        %s428 = scalar_select %p427, %s31, 1
        %s429 = smul.addr %s428, 4
        %s430 = smul.addr %s429, 4
        %s431 = scalar_lea.vmem %s2, %s430
        %p432 = scmp.lt.s32.totalorder %s31, 1
        %s433 = scalar_select %p432, %s31, 1
        %s434 = smul.addr %s433, 4
        %s435 = smul.addr %s434, 4
        %s436 = scalar_lea.vmem %s3, %s435
        %p437 = scmp.lt.s32.totalorder %s31, 1
        %s438 = scalar_select %p437, %s31, 1
        %s439 = smul.addr %s438, 4
        %s440 = smul.addr %s439, 4
        %s441 = scalar_lea.vmem %s4, %s440
        %p442 = scmp.lt.s32.totalorder %s31, 1
        %s443 = scalar_select %p442, %s31, 1
        %s444 = smul.addr %s443, 8
        %s445 = smul.addr %s444, 4
        %s446 = scalar_lea.vmem %s5, %s445
        %p447 = scmp.lt.s32.totalorder %s31, 1
        %s448 = scalar_select %p447, %s31, 1
        %s449 = scalar_lea.vmem %s6, %s448
        %p450 = scmp.lt.s32.totalorder %s31, 1
        %s451 = scalar_select %p450, %s31, 1
        %s452 = scalar_lea.vmem %s7, %s451
        %p454 = scmp.eq.s32.totalorder %s31, 0
        // Predicated region
        $region61: #{tpu_custom_call.1} parent=51 // pred_check
          %p455 = pneg %p454
        $region62: #{tpu_custom_call.1} parent=51 // pred_check_branch
          %457 = sbr.rel (%p455) target = $region64
        $region63: #{tpu_custom_call.1} parent=51 // pred_region
          %v458 = vld [vmem:[%s367] sm:$0xff]
          %vm459 = vcmask 261120
          %460 = vst.msk [vmem:[%s426] sm:$0xff] %vm459, %v458
        $region64: #{tpu_custom_call.1} parent=51 // pred_fallthru
          _
        %v461 = vld [vmem:[%s426] sm:$0xff]
        %s462 = smul.u32 %s31, 128
        %s463 = sld [smem:[#allocation2 + %s462]]
        %s464 = sadd.s32 %s462, 1
        %s465 = sld [smem:[#allocation2 + %s464]]
        %s466 = sadd.s32 %s462, 2
        %s467 = sld [smem:[#allocation2 + %s466]]
        %s468 = sadd.s32 %s462, 3
        %s469 = sld [smem:[#allocation2 + %s468]]
        %s470 = sadd.s32 %s462, 4
        %s471 = sld [smem:[#allocation2 + %s470]]
        %v472 = vand.u32 2147483647, %v461
        %vm473 = vcmask 261120
        %v474 = vsel %vm473, %v472, -inf
        %475 = vmax.xlane.f32.xlu0 %v474
        %v476 = vpop.xlane.xlu0 %475
        %v477 = vmax.f32 %v476, 1e-05
        %v478 = vrcp.pop %v477
        %v479 = vmul.f32 127.0, %v478
        %v480 = vmul.f32 %v461, %v479
        %v481 = vround.ne.pseudo %v480
        %v482 = vmax.f32 %v481, -128.0
        %v483 = vmin.f32 %v482, 127.0
        %v484 = vrcp.pop %v479
        %v485 = vmul.f32 1.0, %v484
        %v486 = vpack.c.bf16 %v483, %v483
        %v487 = vld [vmem:[%s431] sm:$0xf]
        %v488 = vld [vmem:[%s431 + $0x4] sm:$0xf]
        %v489 = vld [vmem:[%s431 + $0x8] sm:$0xf]
        %v490 = vld [vmem:[%s431 + $0xc] sm:$0xf]
        %v495 = vunpack.c.l.b16 %v487
        %v496 = vunpack.c.l.b16 %v488
        %v497 = vunpack.c.l.b16 %v489
        %v498 = vunpack.c.l.b16 %v490
        %v499 = vpack.c.b16 %v496, %v495
        %v500 = vpack.c.b16 %v498, %v497
        %v504 = vsel %vm473, %v486, 0
        %506 = vmatprep.subr.bf16.mxu0 0
        %507 = vmatpush1.bf16.msra.mxu0 %v499
        %508 = vmatprep.subr.bf16.mxu0 0
        %509 = vmatpush1.bf16.msra.mxu0 %v500
        %510 = vmatprep.subr.bf16.mxu0 0
        %511 = vmatpush1.bf16.msra.mxu0 0
        %512 = vmatprep.subr.bf16.mxu0 0
        %513 = vmatpush1.bf16.msra.mxu0 0
        %514 = vmatprep.subr.bf16.mxu0 0
        %515 = vmatpush1.bf16.msra.mxu0 0
        %516 = vmatprep.subr.bf16.mxu0 0
        %517 = vmatpush1.bf16.msra.mxu0 0
        %518 = vmatprep.subr.bf16.mxu0 0
        %519 = vmatpush1.bf16.msra.mxu0 0
        %520 = vmatprep.subr.bf16.mxu0 0
        %521 = vmatpush1.bf16.msra.mxu0 0
        %522 = vmatprep.subr.bf16.mxu0 0
        %523 = vmatpush1.bf16.msra.mxu0 0
        %524 = vmatprep.subr.bf16.mxu0 0
        %525 = vmatpush1.bf16.msra.mxu0 0
        %526 = vmatprep.subr.bf16.mxu0 0
        %527 = vmatpush1.bf16.msra.mxu0 0
        %528 = vmatprep.subr.bf16.mxu0 0
        %529 = vmatpush1.bf16.msra.mxu0 0
        %530 = vmatprep.subr.bf16.mxu0 0
        %531 = vmatpush1.bf16.msra.mxu0 0
        %532 = vmatprep.subr.bf16.mxu0 0
        %533 = vmatpush1.bf16.msra.mxu0 0
        %534 = vmatprep.subr.bf16.mxu0 0
        %535 = vmatpush1.bf16.msra.mxu0 0
        %536 = vmatprep.subr.bf16.mxu0 0
        %537 = vmatpush1.bf16.msra.mxu0 0
        %538 = vmatprep.mubr.bf16.mxu0 0
        %539 = vmatmul.mubr.bf16.gmra.mrb[0].mxu0 %v504
        %v540 = vpop.f32.mrb[0].mxu0
        %v541 = vadd.f32 0.0, %v540
        %v542 = vpop.f32.mrb[0].mxu0
        %v543 = vpop.f32.mrb[0].mxu0
        %v544 = vpop.f32.mrb[0].mxu0
        %545 = vdwg.mxu0
        %v546 = vmul.f32 %v541, %v485
        %v547 = vstv %s463
        %v548 = vmul.f32 %v546, %v547
        %v549 = vstv %s465
        %v550 = vmul.f32 %v546, %v549
        %v551 = vstv %s467
        %v552 = vmul.f32 %v546, %v551
        %554 = vrot.lane.b32.xlu0 %v550, 96
        %v555 = vpop.permute.xlu0 %554
        %v557 = vsel %vm473, %v548, 0
        %v559 = vsel %vm473, %v555, 0
        %561 = vmatprep.subr.mxu0 0.0
        %562 = vmatpush1.xpose.msra.mxu0 %v559
        %563 = vmatprep.subr.mxu0 0.0
        %564 = vmatpush1.xpose.msra.mxu0 0.0
        %565 = vmatprep.subr.mxu0 0.0
        %566 = vmatpush1.xpose.msra.mxu0 0.0
        %567 = vmatprep.subr.mxu0 0.0
        %568 = vmatpush1.xpose.msra.mxu0 0.0
        %569 = vmatprep.subr.mxu0 0.0
        %570 = vmatpush1.xpose.msra.mxu0 0.0
        %571 = vmatprep.subr.mxu0 0.0
        %572 = vmatpush1.xpose.msra.mxu0 0.0
        %573 = vmatprep.subr.mxu0 0.0
        %574 = vmatpush1.xpose.msra.mxu0 0.0
        %575 = vmatprep.subr.mxu0 0.0
        %576 = vmatpush1.xpose.msra.mxu0 0.0
        %577 = vmatprep.subr.mxu0 0.0
        %578 = vmatpush1.xpose.msra.mxu0 0.0
        %579 = vmatprep.subr.mxu0 0.0
        %580 = vmatpush1.xpose.msra.mxu0 0.0
        %581 = vmatprep.subr.mxu0 0.0
        %582 = vmatpush1.xpose.msra.mxu0 0.0
        %583 = vmatprep.subr.mxu0 0.0
        %584 = vmatpush1.xpose.msra.mxu0 0.0
        %585 = vmatprep.subr.mxu0 0.0
        %586 = vmatpush1.xpose.msra.mxu0 0.0
        %587 = vmatprep.subr.mxu0 0.0
        %588 = vmatpush1.xpose.msra.mxu0 0.0
        %589 = vmatprep.subr.mxu0 0.0
        %590 = vmatpush1.xpose.msra.mxu0 0.0
        %591 = vmatprep.subr.mxu0 0.0
        %592 = vmatpush1.xpose.msra.mxu0 0.0
        %593 = vmatprep.subr.mxu0 0.0
        %594 = vmatpush1.xpose.msra.mxu0 0.0
        %595 = vmatprep.subr.mxu0 0.0
        %596 = vmatpush1.xpose.msra.mxu0 0.0
        %597 = vmatprep.subr.mxu0 0.0
        %598 = vmatpush1.xpose.msra.mxu0 0.0
        %599 = vmatprep.subr.mxu0 0.0
        %600 = vmatpush1.xpose.msra.mxu0 0.0
        %601 = vmatprep.subr.mxu0 0.0
        %602 = vmatpush1.xpose.msra.mxu0 0.0
        %603 = vmatprep.subr.mxu0 0.0
        %604 = vmatpush1.xpose.msra.mxu0 0.0
        %605 = vmatprep.subr.mxu0 0.0
        %606 = vmatpush1.xpose.msra.mxu0 0.0
        %607 = vmatprep.subr.mxu0 0.0
        %608 = vmatpush1.xpose.msra.mxu0 0.0
        %609 = vmatprep.subr.mxu0 0.0
        %610 = vmatpush1.xpose.msra.mxu0 0.0
        %611 = vmatprep.subr.mxu0 0.0
        %612 = vmatpush1.xpose.msra.mxu0 0.0
        %613 = vmatprep.subr.mxu0 0.0
        %614 = vmatpush1.xpose.msra.mxu0 0.0
        %615 = vmatprep.subr.mxu0 0.0
        %616 = vmatpush1.xpose.msra.mxu0 0.0
        %617 = vmatprep.subr.mxu0 0.0
        %618 = vmatpush1.xpose.msra.mxu0 0.0
        %619 = vmatprep.subr.mxu0 0.0
        %620 = vmatpush1.xpose.msra.mxu0 0.0
        %621 = vmatprep.subr.mxu0 0.0
        %622 = vmatpush1.xpose.msra.mxu0 0.0
        %623 = vmatprep.subr.mxu0 0.0
        %624 = vmatpush1.xpose.msra.mxu0 0.0
        %625 = vmatprep.mubr.f32.mxu0 0.0
        %626 = vmatmul.mubr.f32.gmra.mrb[0].mxu0 %v557
        %v627 = vpop.f32.mrb[0].mxu0
        %v628 = vadd.f32 0.0, %v627
        %v629 = vpop.f32.mrb[0].mxu0
        %630 = vdwg.mxu0
        %v631 = vmul.f32 %v628, 0.17677669
        %v632 = vlaneseq
        %v633 = vshrl.u32 %v632, 7
        %v634 = vlaneseq
        %v635 = vand.u32 %v634, 127
        %vm636 = vcmp.le.s32.totalorder %v635, %v633
        %v637 = vsel %vm636, %v631, -1e+30
        %vm638 = vcmask 64512
        %v639 = vsel %vm638, %v637, -inf
        %640 = vmax.xlane.f32.xlu0 %v639
        %v641 = vpop.xlane.xlu0 %640
        %v642 = vsub.f32 %v637, %v641
        %v643 = vmul.f32 %v642, 1.442695
        %v644 = vpow.pop %v643
        %v645 = vsel %vm638, %v644, 0.0
        %646 = vadd.xlane.f32.xlu0 %v645
        %v647 = vpop.xlane.xlu0 %646
        %v648 = vrcp.pop %v647
        %v649 = vmul.f32 %v647, %v648
        %v650 = vsub.f32 2.0, %v649
        %v651 = vmul.f32 %v648, %v650
        %v652 = vmul.f32 %v644, %v651
        %654 = vrot.lane.b32.xlu0 %v552, 64
        %v655 = vpop.permute.xlu0 %654
        %v658 = vsel %vm638, %v652, 0
        %660 = vmatprep.subr.mxu0 0.0
        %661 = vmatpush1.msra.mxu0 %v655
        %662 = vmatprep.subr.mxu0 0.0
        %663 = vmatpush1.msra.mxu0 0.0
        %664 = vmatprep.subr.mxu0 0.0
        %665 = vmatpush1.msra.mxu0 0.0
        %666 = vmatprep.subr.mxu0 0.0
        %667 = vmatpush1.msra.mxu0 0.0
        %668 = vmatprep.subr.mxu0 0.0
        %669 = vmatpush1.msra.mxu0 0.0
        %670 = vmatprep.subr.mxu0 0.0
        %671 = vmatpush1.msra.mxu0 0.0
        %672 = vmatprep.subr.mxu0 0.0
        %673 = vmatpush1.msra.mxu0 0.0
        %674 = vmatprep.subr.mxu0 0.0
        %675 = vmatpush1.msra.mxu0 0.0
        %676 = vmatprep.subr.mxu0 0.0
        %677 = vmatpush1.msra.mxu0 0.0
        %678 = vmatprep.subr.mxu0 0.0
        %679 = vmatpush1.msra.mxu0 0.0
        %680 = vmatprep.subr.mxu0 0.0
        %681 = vmatpush1.msra.mxu0 0.0
        %682 = vmatprep.subr.mxu0 0.0
        %683 = vmatpush1.msra.mxu0 0.0
        %684 = vmatprep.subr.mxu0 0.0
        %685 = vmatpush1.msra.mxu0 0.0
        %686 = vmatprep.subr.mxu0 0.0
        %687 = vmatpush1.msra.mxu0 0.0
        %688 = vmatprep.subr.mxu0 0.0
        %689 = vmatpush1.msra.mxu0 0.0
        %690 = vmatprep.subr.mxu0 0.0
        %691 = vmatpush1.msra.mxu0 0.0
        %692 = vmatprep.subr.mxu0 0.0
        %693 = vmatpush1.msra.mxu0 0.0
        %694 = vmatprep.subr.mxu0 0.0
        %695 = vmatpush1.msra.mxu0 0.0
        %696 = vmatprep.subr.mxu0 0.0
        %697 = vmatpush1.msra.mxu0 0.0
        %698 = vmatprep.subr.mxu0 0.0
        %699 = vmatpush1.msra.mxu0 0.0
        %700 = vmatprep.subr.mxu0 0.0
        %701 = vmatpush1.msra.mxu0 0.0
        %702 = vmatprep.subr.mxu0 0.0
        %703 = vmatpush1.msra.mxu0 0.0
        %704 = vmatprep.subr.mxu0 0.0
        %705 = vmatpush1.msra.mxu0 0.0
        %706 = vmatprep.subr.mxu0 0.0
        %707 = vmatpush1.msra.mxu0 0.0
        %708 = vmatprep.subr.mxu0 0.0
        %709 = vmatpush1.msra.mxu0 0.0
        %710 = vmatprep.subr.mxu0 0.0
        %711 = vmatpush1.msra.mxu0 0.0
        %712 = vmatprep.subr.mxu0 0.0
        %713 = vmatpush1.msra.mxu0 0.0
        %714 = vmatprep.subr.mxu0 0.0
        %715 = vmatpush1.msra.mxu0 0.0
        %716 = vmatprep.subr.mxu0 0.0
        %717 = vmatpush1.msra.mxu0 0.0
        %718 = vmatprep.subr.mxu0 0.0
        %719 = vmatpush1.msra.mxu0 0.0
        %720 = vmatprep.subr.mxu0 0.0
        %721 = vmatpush1.msra.mxu0 0.0
        %722 = vmatprep.subr.mxu0 0.0
        %723 = vmatpush1.msra.mxu0 0.0
        %724 = vmatprep.mubr.f32.mxu0 0.0
        %725 = vmatmul.mubr.f32.gmra.mrb[0].mxu0 %v658
        %v726 = vpop.f32.mrb[0].mxu0
        %v727 = vadd.f32 0.0, %v726
        %v728 = vpop.f32.mrb[0].mxu0
        %729 = vdwg.mxu0
        %v730 = vadd.f32 %v461, %v727
        %v731 = vld [vmem:[%s449] sm:$0x1]
        %v732 = vmul.f32 %v730, %v730
        %v733 = vsel %vm473, %v732, 0.0
        %734 = vadd.xlane.f32.xlu0 %v733
        %v735 = vpop.xlane.xlu0 %734
        %v736 = vrcp.pop 32.0
        %v737 = vmul.f32 %v735, %v736
        %v738 = vadd.f32 %v737, 1e-06
        %v739 = vrsqrt.pop %v738
        %v740 = vmul.f32 %v730, %v739
        %v742 = vlaneseq
        %v743 = vshrl.u32 %v742, 7
        %v744 = vsub.s32 0, %v743
        %v745 = vrot.slane %v731, %v744
        %v747 = vmul.f32 %v740, %v745
        %v748 = vand.u32 2147483647, %v747
        %v749 = vsel %vm473, %v748, -inf
        %750 = vmax.xlane.f32.xlu0 %v749
        %v751 = vpop.xlane.xlu0 %750
        %v752 = vmax.f32 %v751, 1e-05
        %v753 = vrcp.pop %v752
        %v754 = vmul.f32 127.0, %v753
        %v755 = vmul.f32 %v747, %v754
        %v756 = vround.ne.pseudo %v755
        %v757 = vmax.f32 %v756, -128.0
        %v758 = vmin.f32 %v757, 127.0
        %v759 = vrcp.pop %v754
        %v760 = vmul.f32 1.0, %v759
        %v761 = vpack.c.bf16 %v758, %v758
        %v762 = vld [vmem:[%s436] sm:$0xf]
        %v763 = vld [vmem:[%s436 + $0x4] sm:$0xf]
        %v764 = vld [vmem:[%s436 + $0x8] sm:$0xf]
        %v765 = vld [vmem:[%s436 + $0xc] sm:$0xf]
        %v770 = vunpack.c.l.b16 %v762
        %v771 = vunpack.c.l.b16 %v763
        %v772 = vunpack.c.l.b16 %v764
        %v773 = vunpack.c.l.b16 %v765
        %v774 = vpack.c.b16 %v771, %v770
        %v775 = vpack.c.b16 %v773, %v772
        %v779 = vsel %vm473, %v761, 0
        %781 = vmatprep.subr.bf16.mxu0 0
        %782 = vmatpush1.bf16.msra.mxu0 %v774
        %783 = vmatprep.subr.bf16.mxu0 0
        %784 = vmatpush1.bf16.msra.mxu0 %v775
        %785 = vmatprep.subr.bf16.mxu0 0
        %786 = vmatpush1.bf16.msra.mxu0 0
        %787 = vmatprep.subr.bf16.mxu0 0
        %788 = vmatpush1.bf16.msra.mxu0 0
        %789 = vmatprep.subr.bf16.mxu0 0
        %790 = vmatpush1.bf16.msra.mxu0 0
        %791 = vmatprep.subr.bf16.mxu0 0
        %792 = vmatpush1.bf16.msra.mxu0 0
        %793 = vmatprep.subr.bf16.mxu0 0
        %794 = vmatpush1.bf16.msra.mxu0 0
        %795 = vmatprep.subr.bf16.mxu0 0
        %796 = vmatpush1.bf16.msra.mxu0 0
        %797 = vmatprep.subr.bf16.mxu0 0
        %798 = vmatpush1.bf16.msra.mxu0 0
        %799 = vmatprep.subr.bf16.mxu0 0
        %800 = vmatpush1.bf16.msra.mxu0 0
        %801 = vmatprep.subr.bf16.mxu0 0
        %802 = vmatpush1.bf16.msra.mxu0 0
        %803 = vmatprep.subr.bf16.mxu0 0
        %804 = vmatpush1.bf16.msra.mxu0 0
        %805 = vmatprep.subr.bf16.mxu0 0
        %806 = vmatpush1.bf16.msra.mxu0 0
        %807 = vmatprep.subr.bf16.mxu0 0
        %808 = vmatpush1.bf16.msra.mxu0 0
        %809 = vmatprep.subr.bf16.mxu0 0
        %810 = vmatpush1.bf16.msra.mxu0 0
        %811 = vmatprep.subr.bf16.mxu0 0
        %812 = vmatpush1.bf16.msra.mxu0 0
        %813 = vmatprep.mubr.bf16.mxu0 0
        %814 = vmatmul.mubr.bf16.gmra.mrb[0].mxu0 %v779
        %v815 = vpop.f32.mrb[0].mxu0
        %v816 = vadd.f32 0.0, %v815
        %v817 = vpop.f32.mrb[0].mxu0
        %v818 = vpop.f32.mrb[0].mxu0
        %v819 = vpop.f32.mrb[0].mxu0
        %820 = vdwg.mxu0
        %v821 = vmul.f32 %v816, %v760
        %v822 = vstv %s469
        %v823 = vmul.f32 %v821, %v822
        %v824 = vld [vmem:[%s441] sm:$0xf]
        %v825 = vld [vmem:[%s441 + $0x4] sm:$0xf]
        %v826 = vld [vmem:[%s441 + $0x8] sm:$0xf]
        %v827 = vld [vmem:[%s441 + $0xc] sm:$0xf]
        %v832 = vunpack.c.l.b16 %v824
        %v833 = vunpack.c.l.b16 %v825
        %v834 = vunpack.c.l.b16 %v826
        %v835 = vunpack.c.l.b16 %v827
        %v836 = vpack.c.b16 %v833, %v832
        %v837 = vpack.c.b16 %v835, %v834
        %840 = vmatprep.subr.bf16.mxu0 0
        %841 = vmatpush1.bf16.msra.mxu0 %v836
        %842 = vmatprep.subr.bf16.mxu0 0
        %843 = vmatpush1.bf16.msra.mxu0 %v837
        %844 = vmatprep.subr.bf16.mxu0 0
        %845 = vmatpush1.bf16.msra.mxu0 0
        %846 = vmatprep.subr.bf16.mxu0 0
        %847 = vmatpush1.bf16.msra.mxu0 0
        %848 = vmatprep.subr.bf16.mxu0 0
        %849 = vmatpush1.bf16.msra.mxu0 0
        %850 = vmatprep.subr.bf16.mxu0 0
        %851 = vmatpush1.bf16.msra.mxu0 0
        %852 = vmatprep.subr.bf16.mxu0 0
        %853 = vmatpush1.bf16.msra.mxu0 0
        %854 = vmatprep.subr.bf16.mxu0 0
        %855 = vmatpush1.bf16.msra.mxu0 0
        %856 = vmatprep.subr.bf16.mxu0 0
        %857 = vmatpush1.bf16.msra.mxu0 0
        %858 = vmatprep.subr.bf16.mxu0 0
        %859 = vmatpush1.bf16.msra.mxu0 0
        %860 = vmatprep.subr.bf16.mxu0 0
        %861 = vmatpush1.bf16.msra.mxu0 0
        %862 = vmatprep.subr.bf16.mxu0 0
        %863 = vmatpush1.bf16.msra.mxu0 0
        %864 = vmatprep.subr.bf16.mxu0 0
        %865 = vmatpush1.bf16.msra.mxu0 0
        %866 = vmatprep.subr.bf16.mxu0 0
        %867 = vmatpush1.bf16.msra.mxu0 0
        %868 = vmatprep.subr.bf16.mxu0 0
        %869 = vmatpush1.bf16.msra.mxu0 0
        %870 = vmatprep.subr.bf16.mxu0 0
        %871 = vmatpush1.bf16.msra.mxu0 0
        %872 = vmatprep.mubr.bf16.mxu0 0
        %873 = vmatmul.mubr.bf16.gmra.mrb[0].mxu0 %v779
        %v874 = vpop.f32.mrb[0].mxu0
        %v875 = vadd.f32 0.0, %v874
        %v876 = vpop.f32.mrb[0].mxu0
        %v877 = vpop.f32.mrb[0].mxu0
        %v878 = vpop.f32.mrb[0].mxu0
        %879 = vdwg.mxu0
        %v880 = vmul.f32 %v875, %v760
        %v881 = vmul.f32 %v880, %v822
        %v882 = vxor.u32 %v881, 2147483648
        %v883 = vmul.f32 %v882, 1.442695
        %v884 = vpow.pop %v883
        %v885 = vadd.f32 %v884, 1.0
        %v886 = vrcp.pop %v885
        %v887 = vmul.f32 1.0, %v886
        %v888 = vmul.f32 %v881, %v887
        %v889 = vmul.f32 %v823, %v888
        %v890 = vand.u32 2147483647, %v889
        %vm891 = vcmask 523264
        %v892 = vsel %vm891, %v890, -inf
        %893 = vmax.xlane.f32.xlu0 %v892
        %v894 = vpop.xlane.xlu0 %893
        %v895 = vmax.f32 %v894, 1e-05
        %v896 = vrcp.pop %v895
        %v897 = vmul.f32 127.0, %v896
        %v898 = vmul.f32 %v889, %v897
        %v899 = vround.ne.pseudo %v898
        %v900 = vmax.f32 %v899, -128.0
        %v901 = vmin.f32 %v900, 127.0
        %v902 = vrcp.pop %v897
        %v903 = vmul.f32 1.0, %v902
        %v904 = vpack.c.bf16 %v901, %v901
        %v905 = vld [vmem:[%s446] sm:$0xf]
        %v906 = vld [vmem:[%s446 + $0x4] sm:$0xf]
        %v907 = vld [vmem:[%s446 + $0x8] sm:$0xf]
        %v908 = vld [vmem:[%s446 + $0xc] sm:$0xf]
        %v909 = vld [vmem:[%s446 + $0x10] sm:$0xf]
        %v910 = vld [vmem:[%s446 + $0x14] sm:$0xf]
        %v911 = vld [vmem:[%s446 + $0x18] sm:$0xf]
        %v912 = vld [vmem:[%s446 + $0x1c] sm:$0xf]
        %v921 = vunpack.c.l.b16 %v905
        %v922 = vunpack.c.l.b16 %v906
        %v923 = vunpack.c.l.b16 %v907
        %v924 = vunpack.c.l.b16 %v908
        %v925 = vunpack.c.l.b16 %v909
        %v926 = vunpack.c.l.b16 %v910
        %v927 = vunpack.c.l.b16 %v911
        %v928 = vunpack.c.l.b16 %v912
        %v929 = vpack.c.b16 %v922, %v921
        %v930 = vpack.c.b16 %v924, %v923
        %v931 = vpack.c.b16 %v926, %v925
        %v932 = vpack.c.b16 %v928, %v927
        %v938 = vsel %vm891, %v904, 0
        %940 = vmatprep.subr.bf16.mxu0 0
        %941 = vmatpush1.bf16.msra.mxu0 %v929
        %942 = vmatprep.subr.bf16.mxu0 0
        %943 = vmatpush1.bf16.msra.mxu0 %v930
        %944 = vmatprep.subr.bf16.mxu0 0
        %945 = vmatpush1.bf16.msra.mxu0 %v931
        %946 = vmatprep.subr.bf16.mxu0 0
        %947 = vmatpush1.bf16.msra.mxu0 %v932
        %948 = vmatprep.subr.bf16.mxu0 0
        %949 = vmatpush1.bf16.msra.mxu0 0
        %950 = vmatprep.subr.bf16.mxu0 0
        %951 = vmatpush1.bf16.msra.mxu0 0
        %952 = vmatprep.subr.bf16.mxu0 0
        %953 = vmatpush1.bf16.msra.mxu0 0
        %954 = vmatprep.subr.bf16.mxu0 0
        %955 = vmatpush1.bf16.msra.mxu0 0
        %956 = vmatprep.subr.bf16.mxu0 0
        %957 = vmatpush1.bf16.msra.mxu0 0
        %958 = vmatprep.subr.bf16.mxu0 0
        %959 = vmatpush1.bf16.msra.mxu0 0
        %960 = vmatprep.subr.bf16.mxu0 0
        %961 = vmatpush1.bf16.msra.mxu0 0
        %962 = vmatprep.subr.bf16.mxu0 0
        %963 = vmatpush1.bf16.msra.mxu0 0
        %964 = vmatprep.subr.bf16.mxu0 0
        %965 = vmatpush1.bf16.msra.mxu0 0
        %966 = vmatprep.subr.bf16.mxu0 0
        %967 = vmatpush1.bf16.msra.mxu0 0
        %968 = vmatprep.subr.bf16.mxu0 0
        %969 = vmatpush1.bf16.msra.mxu0 0
        %970 = vmatprep.subr.bf16.mxu0 0
        %971 = vmatpush1.bf16.msra.mxu0 0
        %972 = vmatprep.mubr.bf16.mxu0 0
        %973 = vmatmul.mubr.bf16.gmra.mrb[0].mxu0 %v938
        %v974 = vpop.f32.mrb[0].mxu0
        %v975 = vadd.f32 0.0, %v974
        %v976 = vpop.f32.mrb[0].mxu0
        %v977 = vpop.f32.mrb[0].mxu0
        %v978 = vpop.f32.mrb[0].mxu0
        %979 = vdwg.mxu0
        %v980 = vmul.f32 %v975, %v903
        %v981 = vstv %s471
        %v982 = vmul.f32 %v980, %v981
        %v983 = vadd.f32 %v747, %v982
        %v984 = vld [vmem:[%s452] sm:$0x1]
        %v985 = vmul.f32 %v983, %v983
        %v986 = vsel %vm473, %v985, 0.0
        %987 = vadd.xlane.f32.xlu0 %v986
        %v988 = vpop.xlane.xlu0 %987
        %v989 = vmul.f32 %v988, %v736
        %v990 = vadd.f32 %v989, 1e-06
        %v991 = vrsqrt.pop %v990
        %v992 = vmul.f32 %v983, %v991
        %v994 = vlaneseq
        %v995 = vshrl.u32 %v994, 7
        %v996 = vsub.s32 0, %v995
        %v997 = vrot.slane %v984, %v996
        %v999 = vmul.f32 %v992, %v997
        %1000 = vst.msk [vmem:[%s426] sm:$0xff] %vm473, %v999
        %s1001 = sand.u32 %s249, 1
        %s1002 = scalar_lea.sflag [#allocation4], %s1001
        %s1003 = sand.u32 %s249, 1
        %s1004 = smul.addr %s1003, 8
        %s1005 = scalar_lea.vmem [#allocation7], %s1004
        // Predicated region
        $region65: #{tpu_custom_call.1} parent=51 // pred_check
          %p1006 = pneg %p259
        $region66: #{tpu_custom_call.1} parent=51 // pred_check_branch
          %1008 = sbr.rel (%p1006) target = $region68
        $region67: #{tpu_custom_call.1} parent=51 // pred_region
          %s1010 = ssub.s32 128, 128
          %1011 = vsyncadd %s1002, %s1010
          %s1012 = smul.addr %s30, 128
          %s1013 = scalar_lea.hbm %s8, %s1012
          %s1015 = sshll.u32 %s1005, 4
          %s1016 = int_to_ptr.vmem [resolvable:$true] %s1015
          %1018 = dma.vmem_to_hbm [thread:$0]  %s1016, 128, %s1013, %s1002
        $region68: #{tpu_custom_call.1} parent=51 // pred_fallthru
          _
      $region52: #{tpu_custom_call.1} parent=5 // pred_fallthru
        _
      %p1019 = scmp.le.s32.totalorder 2, %s21
      // Predicated region
      $region69: #{tpu_custom_call.1} parent=5 // pred_check
        %p1020 = pneg %p1019
      $region70: #{tpu_custom_call.1} parent=5 // pred_check_branch
        %1022 = sbr.rel (%p1020) target = $region72
      $region71: #{tpu_custom_call.1} parent=5 // pred_region
        %s1023 = ssub.s32 %s21, 2
        // Predicated region
        $region73: #{tpu_custom_call.1} parent=71 // pred_check
          %p1024 = pneg %p265
        $region74: #{tpu_custom_call.1} parent=71 // pred_check_branch
          %1026 = sbr.rel (%p1024) target = $region76
        $region75: #{tpu_custom_call.1} parent=71 // pred_region
          %s1027 = sand.u32 %s250, 1
          %s1028 = scalar_lea.sflag [#allocation4], %s1027
          %s1029 = sand.u32 %s250, 1
          %s1030 = smul.addr %s1029, 8
          %s1031 = scalar_lea.vmem [#allocation7], %s1030
          %1032 = dma.done %s1028, 128
        $region76: #{tpu_custom_call.1} parent=71 // pred_fallthru
          _
      $region72: #{tpu_custom_call.1} parent=5 // pred_fallthru
        _
    $region6: #{tpu_custom_call.1} parent=1 // loop_footer
      %s25 = sadd.s32 1, %s21
    $region7: #{tpu_custom_call.1} parent=1 // loop_footer_branch
      %20 = sbr.rel target = $region3
    $region8: #{tpu_custom_call.1} parent=1 // loop_exit
      _
    %1033 = vsyncpa [#allocation3], 1
    %s1034 = scalar_lea.sflag [#allocation3], 1
    %1035 = vsyncpa %s1034, 1
    %1036 = vsyncpa [#allocation4], 1
    %s1037 = scalar_lea.sflag [#allocation4], 1
    %1038 = vsyncpa %s1037, 1
    %1039 = vsyncpa [#allocation5], 1
    %s1040 = scalar_lea.sflag [#allocation5], 1
    %1041 = vsyncpa %s1040, 1

</llo_original>
